<compile_context>
chip_gen: v5e
topology: v5e:2x2
jax: 0.10.0
libtpu: 0.0.40
codegen_flags: <defaults>
</compile_context>

<pallas_src>
import functools

import jax
import jax.numpy as jnp
from jax.experimental import pallas as pl
from jax.experimental.pallas import tpu as pltpu

_LANES = 128
_SUBLANES = 8


def _round_up(n, m):
    return ((n + m - 1) // m) * m


def _make_layout(feature_dim, latent_dim, hidden_dim):
    """Row layout of the packed parameter slab (static, computed in Python)."""
    pieces = [
        ("enc_w1",    feature_dim, hidden_dim),
        ("enc_b1",    1,           hidden_dim),
        ("enc_w2_mu", hidden_dim,  latent_dim),
        ("enc_w2_ls", hidden_dim,  latent_dim),
        ("enc_b2_mu", 1,           latent_dim),
        ("enc_b2_ls", 1,           latent_dim),
        ("dec_w1",    latent_dim,  hidden_dim),
        ("dec_b1",    1,           hidden_dim),
        ("dec_w2_mu", hidden_dim,  feature_dim),
        ("dec_w2_ls", hidden_dim,  feature_dim),
        ("dec_b2_mu", 1,           feature_dim),
        ("dec_b2_ls", 1,           feature_dim),
    ]
    layout = {}
    row = 0
    max_cols = 0
    for name, nrows, ncols in pieces:
        layout[name] = (row, nrows, ncols)
        row += _round_up(nrows, _SUBLANES)
        max_cols = max(max_cols, ncols)
    n_rows = _round_up(row, _SUBLANES)
    n_cols = _round_up(max(max_cols, _LANES), _LANES)
    return layout, n_rows, n_cols


def _pack_params(params, feature_dim, latent_dim, hidden_dim):
    """Split the chunked 2nd-layer weights into (mu | log_sigma) halves and pack
    everything into one lane-dense f32 slab -> one input DMA."""
    L, F = latent_dim, feature_dim
    pieces = {
        "enc_w1":    params["enc_w1"],
        "enc_b1":    params["enc_b1"].reshape(1, -1),
        "enc_w2_mu": params["enc_w2"][:, :L],
        "enc_w2_ls": params["enc_w2"][:, L:],
        "enc_b2_mu": params["enc_b2"].reshape(1, -1)[:, :L],
        "enc_b2_ls": params["enc_b2"].reshape(1, -1)[:, L:],
        "dec_w1":    params["dec_w1"],
        "dec_b1":    params["dec_b1"].reshape(1, -1),
        "dec_w2_mu": params["dec_w2"][:, :F],
        "dec_w2_ls": params["dec_w2"][:, F:],
        "dec_b2_mu": params["dec_b2"].reshape(1, -1)[:, :F],
        "dec_b2_ls": params["dec_b2"].reshape(1, -1)[:, F:],
    }
    layout, n_rows, n_cols = _make_layout(feature_dim, latent_dim, hidden_dim)
    slab = jnp.zeros((n_rows, n_cols), jnp.float32)
    for name, (r0, nr, nc) in layout.items():
        slab = slab.at[r0:r0 + nr, :nc].set(pieces[name].astype(jnp.float32))
    return slab, layout


def _vae_fwd_kernel(x_ref, eps_ref, p_ref, out_ref, *,
                    layout, latent_dim, feature_dim):
    """Fused VAE forward for one batch block.

       encoder:  h  = relu(x @ W1 + b1);  mu, log_sigma = split(h @ W2 + b2)
       q(z|x):   sigma = exp(log_sigma);  z = mu + sigma * eps   (rsample)
       decoder:  hd = relu(z @ W3 + b3);  px_mu, px_log_sigma = split(hd @ W4 + b4)
       p(x|z):   N(px_mu, exp(px_log_sigma))
    """
    L, F = latent_dim, feature_dim

    def piece(name):
        r0, nr, nc = layout[name]
        return p_ref[r0:r0 + nr, 0:nc]

    x = x_ref[...]
    eps = eps_ref[...]

    # --- encoder (the module's `self.encoder`) ---
    h = jnp.dot(x, piece("enc_w1"), preferred_element_type=jnp.float32) + piece("enc_b1")
    h = jnp.maximum(h, 0.0)
    mu = jnp.dot(h, piece("enc_w2_mu"), preferred_element_type=jnp.float32) + piece("enc_b2_mu")
    log_sigma = jnp.dot(h, piece("enc_w2_ls"), preferred_element_type=jnp.float32) + piece("enc_b2_ls")
    sigma = jnp.exp(log_sigma)

    # --- reparameterized sample z = qz.rsample() ---
    z = mu + sigma * eps

    # --- decoder (the module's `self.decoder`) ---
    hd = jnp.dot(z, piece("dec_w1"), preferred_element_type=jnp.float32) + piece("dec_b1")
    hd = jnp.maximum(hd, 0.0)
    px_mu = jnp.dot(hd, piece("dec_w2_mu"), preferred_element_type=jnp.float32) + piece("dec_b2_mu")
    px_sigma = jnp.exp(
        jnp.dot(hd, piece("dec_w2_ls"), preferred_element_type=jnp.float32) + piece("dec_b2_ls"))

    # --- pack everything into the single lane-dense output slab (1 writeback DMA) ---
    out_ref[...] = jnp.zeros_like(out_ref)           # zero padding lanes
    out_ref[:, 0:L] = z
    out_ref[:, L:2 * L] = mu
    out_ref[:, 2 * L:3 * L] = sigma
    out_ref[:, 3 * L:3 * L + F] = px_mu
    out_ref[:, 3 * L + F:3 * L + 2 * F] = px_sigma


def vae_forward(x, eps, packed_params, layout, *, latent_dim, feature_dim,
                block_rows=256):
    """Returns dict mirroring the torch forward(): distribution params + z."""
    B = x.shape[0]
    L, F = latent_dim, feature_dim
    out_cols = _round_up(3 * L + 2 * F, _LANES)

    if B <= block_rows:
        tb = B
    else:
        assert B % block_rows == 0, "batch must be a multiple of block_rows"
        tb = block_rows
    grid = (B // tb,)

    kernel = functools.partial(_vae_fwd_kernel, layout=layout,
                               latent_dim=L, feature_dim=F)

    packed_out = pl.pallas_call(
        kernel,
        out_shape=jax.ShapeDtypeStruct((B, out_cols), jnp.float32),
        grid=grid,
        in_specs=[
            pl.BlockSpec((tb, x.shape[1]), lambda i: (i, 0)),       # x block
            pl.BlockSpec((tb, L), lambda i: (i, 0)),                # eps block
            pl.BlockSpec(packed_params.shape, lambda i: (0, 0)),    # weights resident
        ],
        out_specs=pl.BlockSpec((tb, out_cols), lambda i: (i, 0)),
        compiler_params=pltpu.CompilerParams(
            dimension_semantics=("parallel",)),  # megacore sharding on v7x
    )(x, eps, packed_params)

    z = packed_out[:, 0:L]
    q_mu = packed_out[:, L:2 * L]
    q_sigma = packed_out[:, 2 * L:3 * L]
    px_mu = packed_out[:, 3 * L:3 * L + F]
    px_sigma = packed_out[:, 3 * L + F:3 * L + 2 * F]

    # prior p(z) = N(0, I): prior_params buffer is zeros -> mu=0, sigma=exp(0)=1.
    pz_mu = jnp.zeros((B, L), jnp.float32)
    pz_sigma = jnp.ones((B, L), jnp.float32)

    return {
        "px": (px_mu, px_sigma),
        "pz": (pz_mu, pz_sigma),
        "qz": (q_mu, q_sigma),
        "z": z,
    }


def _init_params(key, feature_dim, latent_dim, hidden_dim):
    ks = jax.random.split(key, 8)
    s = 0.1
    return {
        # encoder: feature_dim -> hidden -> 2*latent_dim
        "enc_w1": s * jax.random.normal(ks[0], (feature_dim, hidden_dim), jnp.float32),
        "enc_b1": s * jax.random.normal(ks[1], (1, hidden_dim), jnp.float32),
        "enc_w2": s * jax.random.normal(ks[2], (hidden_dim, 2 * latent_dim), jnp.float32),
        "enc_b2": s * jax.random.normal(ks[3], (1, 2 * latent_dim), jnp.float32),
        # decoder: latent_dim -> hidden -> 2*feature_dim
        "dec_w1": s * jax.random.normal(ks[4], (latent_dim, hidden_dim), jnp.float32),
        "dec_b1": s * jax.random.normal(ks[5], (1, hidden_dim), jnp.float32),
        "dec_w2": s * jax.random.normal(ks[6], (hidden_dim, 2 * feature_dim), jnp.float32),
        "dec_b2": s * jax.random.normal(ks[7], (1, 2 * feature_dim), jnp.float32),
    }


def _reference_forward(x, eps, p):
    """Pure-JAX reference for correctness check."""
    h = jnp.maximum(x @ p["enc_w1"] + p["enc_b1"], 0.0)
    h_x = h @ p["enc_w2"] + p["enc_b2"]
    latent_dim = eps.shape[-1]
    mu, log_sigma = h_x[:, :latent_dim], h_x[:, latent_dim:]
    sigma = jnp.exp(log_sigma)
    z = mu + sigma * eps
    hd = jnp.maximum(z @ p["dec_w1"] + p["dec_b1"], 0.0)
    h_z = hd @ p["dec_w2"] + p["dec_b2"]
    fd = h_z.shape[-1] // 2
    return z, mu, sigma, h_z[:, :fd], jnp.exp(h_z[:, fd:])


if __name__ == "__main__":
    B, feature_dim, latent_dim, hidden_dim = 8, 16, 8, 32

    key = jax.random.PRNGKey(0)
    k_x, k_eps, k_params = jax.random.split(key, 3)

    x = jax.random.normal(k_x, (B, feature_dim), jnp.float32)
    eps = jax.random.normal(k_eps, (B, latent_dim), jnp.float32)  # rsample noise
    params = _init_params(k_params, feature_dim, latent_dim, hidden_dim)

    packed_params, layout = _pack_params(params, feature_dim, latent_dim, hidden_dim)

    out = vae_forward(x, eps, packed_params, layout,
                      latent_dim=latent_dim, feature_dim=feature_dim)
    jax.block_until_ready(out)

    # sanity check against pure-JAX reference
    ref = _reference_forward(x, eps, params)
    got = (out["z"], out["qz"][0], out["qz"][1], out["px"][0], out["px"][1])
    for g, r in zip(got, ref):
        assert jnp.allclose(g, r, atol=1e-5, rtol=1e-5), "mismatch vs reference"

    print("KERNEL_OK")
</pallas_src>

<mosaic_0001>
module attributes {stable_mosaic.version = 11 : i64} {
  func.func @_vae_fwd_kernel(%arg0: i32, %arg1: memref<8x16xf32, #tpu.memory_space<vmem>>, %arg2: memref<8x8xf32, #tpu.memory_space<vmem>>, %arg3: memref<200x128xf32, #tpu.memory_space<vmem>>, %arg4: memref<8x128xf32, #tpu.memory_space<vmem>>) attributes {dimension_semantics = [#tpu.dimension_semantics<parallel>], iteration_bounds = array<i64: 1>, scalar_prefetch = 0 : i64, scratch_operands = 0 : i64, tpu.core_type = #tpu.core_type<tc>, window_params = [{transform_indices = @transform_0, window_bounds = array<i64: 8, 16>}, {transform_indices = @transform_1, window_bounds = array<i64: 8, 8>}, {pipeline_mode = #tpu.pipeline_mode<synchronous>, transform_indices = @transform_2, window_bounds = array<i64: 200, 128>}, {transform_indices = @transform_3, window_bounds = array<i64: 8, 128>}]} {
    %c0 = arith.constant 0 : index
    %c0_0 = arith.constant 0 : index
    %0 = vector.load %arg1[%c0, %c0_0] : memref<8x16xf32, #tpu.memory_space<vmem>>, vector<8x16xf32>
    %c0_1 = arith.constant 0 : index
    %c0_2 = arith.constant 0 : index
    %1 = vector.load %arg2[%c0_1, %c0_2] : memref<8x8xf32, #tpu.memory_space<vmem>>, vector<8x8xf32>
    %c0_3 = arith.constant 0 : index
    %c0_4 = arith.constant 0 : index
    %2 = vector.load %arg3[%c0_3, %c0_4] : memref<200x128xf32, #tpu.memory_space<vmem>>, vector<16x32xf32>
    %cst = arith.constant dense<0.000000e+00> : vector<8x32xf32>
    %3 = tpu.matmul %0, %2, %cst {dimension_numbers = #tpu.dot_dimension_numbers<[1], [0], [0], [1], [0, 0, 1, 1], [], []>} : vector<8x16xf32>, vector<16x32xf32>, vector<8x32xf32> -> vector<8x32xf32>
    %c16 = arith.constant 16 : index
    %c0_5 = arith.constant 0 : index
    %4 = vector.load %arg3[%c16, %c0_5] : memref<200x128xf32, #tpu.memory_space<vmem>>, vector<1x32xf32>
    %5 = vector.broadcast %4 : vector<1x32xf32> to vector<8x32xf32>
    %6 = arith.addf %3, %5 : vector<8x32xf32>
    %cst_6 = arith.constant 0.000000e+00 : f32
    %7 = vector.broadcast %cst_6 : f32 to vector<8x32xf32>
    %8 = arith.maximumf %6, %7 : vector<8x32xf32>
    %c24 = arith.constant 24 : index
    %c0_7 = arith.constant 0 : index
    %9 = vector.load %arg3[%c24, %c0_7] : memref<200x128xf32, #tpu.memory_space<vmem>>, vector<32x8xf32>
    %cst_8 = arith.constant dense<0.000000e+00> : vector<8x8xf32>
    %10 = tpu.matmul %8, %9, %cst_8 {dimension_numbers = #tpu.dot_dimension_numbers<[1], [0], [0], [1], [0, 0, 1, 1], [], []>} : vector<8x32xf32>, vector<32x8xf32>, vector<8x8xf32> -> vector<8x8xf32>
    %c88 = arith.constant 88 : index
    %c0_9 = arith.constant 0 : index
    %11 = vector.load %arg3[%c88, %c0_9] : memref<200x128xf32, #tpu.memory_space<vmem>>, vector<1x8xf32>
    %12 = vector.broadcast %11 : vector<1x8xf32> to vector<8x8xf32>
    %13 = arith.addf %10, %12 : vector<8x8xf32>
    %c56 = arith.constant 56 : index
    %c0_10 = arith.constant 0 : index
    %14 = vector.load %arg3[%c56, %c0_10] : memref<200x128xf32, #tpu.memory_space<vmem>>, vector<32x8xf32>
    %cst_11 = arith.constant dense<0.000000e+00> : vector<8x8xf32>
    %15 = tpu.matmul %8, %14, %cst_11 {dimension_numbers = #tpu.dot_dimension_numbers<[1], [0], [0], [1], [0, 0, 1, 1], [], []>} : vector<8x32xf32>, vector<32x8xf32>, vector<8x8xf32> -> vector<8x8xf32>
    %c96 = arith.constant 96 : index
    %c0_12 = arith.constant 0 : index
    %16 = vector.load %arg3[%c96, %c0_12] : memref<200x128xf32, #tpu.memory_space<vmem>>, vector<1x8xf32>
    %17 = vector.broadcast %16 : vector<1x8xf32> to vector<8x8xf32>
    %18 = arith.addf %15, %17 : vector<8x8xf32>
    %19 = math.exp %18 : vector<8x8xf32>
    %20 = arith.mulf %19, %1 : vector<8x8xf32>
    %21 = arith.addf %13, %20 : vector<8x8xf32>
    %c104 = arith.constant 104 : index
    %c0_13 = arith.constant 0 : index
    %22 = vector.load %arg3[%c104, %c0_13] : memref<200x128xf32, #tpu.memory_space<vmem>>, vector<8x32xf32>
    %cst_14 = arith.constant dense<0.000000e+00> : vector<8x32xf32>
    %23 = tpu.matmul %21, %22, %cst_14 {dimension_numbers = #tpu.dot_dimension_numbers<[1], [0], [0], [1], [0, 0, 1, 1], [], []>} : vector<8x8xf32>, vector<8x32xf32>, vector<8x32xf32> -> vector<8x32xf32>
    %c112 = arith.constant 112 : index
    %c0_15 = arith.constant 0 : index
    %24 = vector.load %arg3[%c112, %c0_15] : memref<200x128xf32, #tpu.memory_space<vmem>>, vector<1x32xf32>
    %25 = vector.broadcast %24 : vector<1x32xf32> to vector<8x32xf32>
    %26 = arith.addf %23, %25 : vector<8x32xf32>
    %cst_16 = arith.constant 0.000000e+00 : f32
    %27 = vector.broadcast %cst_16 : f32 to vector<8x32xf32>
    %28 = arith.maximumf %26, %27 : vector<8x32xf32>
    %c120 = arith.constant 120 : index
    %c0_17 = arith.constant 0 : index
    %29 = vector.load %arg3[%c120, %c0_17] : memref<200x128xf32, #tpu.memory_space<vmem>>, vector<32x16xf32>
    %cst_18 = arith.constant dense<0.000000e+00> : vector<8x16xf32>
    %30 = tpu.matmul %28, %29, %cst_18 {dimension_numbers = #tpu.dot_dimension_numbers<[1], [0], [0], [1], [0, 0, 1, 1], [], []>} : vector<8x32xf32>, vector<32x16xf32>, vector<8x16xf32> -> vector<8x16xf32>
    %c184 = arith.constant 184 : index
    %c0_19 = arith.constant 0 : index
    %31 = vector.load %arg3[%c184, %c0_19] : memref<200x128xf32, #tpu.memory_space<vmem>>, vector<1x16xf32>
    %32 = vector.broadcast %31 : vector<1x16xf32> to vector<8x16xf32>
    %33 = arith.addf %30, %32 : vector<8x16xf32>
    %c152 = arith.constant 152 : index
    %c0_20 = arith.constant 0 : index
    %34 = vector.load %arg3[%c152, %c0_20] : memref<200x128xf32, #tpu.memory_space<vmem>>, vector<32x16xf32>
    %cst_21 = arith.constant dense<0.000000e+00> : vector<8x16xf32>
    %35 = tpu.matmul %28, %34, %cst_21 {dimension_numbers = #tpu.dot_dimension_numbers<[1], [0], [0], [1], [0, 0, 1, 1], [], []>} : vector<8x32xf32>, vector<32x16xf32>, vector<8x16xf32> -> vector<8x16xf32>
    %c192 = arith.constant 192 : index
    %c0_22 = arith.constant 0 : index
    %36 = vector.load %arg3[%c192, %c0_22] : memref<200x128xf32, #tpu.memory_space<vmem>>, vector<1x16xf32>
    %37 = vector.broadcast %36 : vector<1x16xf32> to vector<8x16xf32>
    %38 = arith.addf %35, %37 : vector<8x16xf32>
    %39 = math.exp %38 : vector<8x16xf32>
    %cst_23 = arith.constant 0.000000e+00 : f32
    %40 = vector.broadcast %cst_23 : f32 to vector<8x128xf32>
    %c0_24 = arith.constant 0 : index
    %c0_25 = arith.constant 0 : index
    %41 = vector.load %arg4[%c0_24, %c0_25] : memref<8x128xf32, #tpu.memory_space<vmem>>, vector<8x128xf32>
    tpu.vector_store %arg4[%c0_24, %c0_25], %40 {strides = array<i32>} : memref<8x128xf32, #tpu.memory_space<vmem>>, vector<8x128xf32>,
    %c0_26 = arith.constant 0 : index
    %c0_27 = arith.constant 0 : index
    %42 = vector.load %arg4[%c0_26, %c0_27] : memref<8x128xf32, #tpu.memory_space<vmem>>, vector<8x8xf32>
    tpu.vector_store %arg4[%c0_26, %c0_27], %21 {strides = array<i32>} : memref<8x128xf32, #tpu.memory_space<vmem>>, vector<8x8xf32>,
    %c0_28 = arith.constant 0 : index
    %c8 = arith.constant 8 : index
    %43 = vector.load %arg4[%c0_28, %c8] : memref<8x128xf32, #tpu.memory_space<vmem>>, vector<8x8xf32>
    tpu.vector_store %arg4[%c0_28, %c8], %13 {strides = array<i32>} : memref<8x128xf32, #tpu.memory_space<vmem>>, vector<8x8xf32>,
    %c0_29 = arith.constant 0 : index
    %c16_30 = arith.constant 16 : index
    %44 = vector.load %arg4[%c0_29, %c16_30] : memref<8x128xf32, #tpu.memory_space<vmem>>, vector<8x8xf32>
    tpu.vector_store %arg4[%c0_29, %c16_30], %19 {strides = array<i32>} : memref<8x128xf32, #tpu.memory_space<vmem>>, vector<8x8xf32>,
    %c0_31 = arith.constant 0 : index
    %c24_32 = arith.constant 24 : index
    %45 = vector.load %arg4[%c0_31, %c24_32] : memref<8x128xf32, #tpu.memory_space<vmem>>, vector<8x16xf32>
    tpu.vector_store %arg4[%c0_31, %c24_32], %33 {strides = array<i32>} : memref<8x128xf32, #tpu.memory_space<vmem>>, vector<8x16xf32>,
    %c0_33 = arith.constant 0 : index
    %c40 = arith.constant 40 : index
    %46 = vector.load %arg4[%c0_33, %c40] : memref<8x128xf32, #tpu.memory_space<vmem>>, vector<8x16xf32>
    tpu.vector_store %arg4[%c0_33, %c40], %39 {strides = array<i32>} : memref<8x128xf32, #tpu.memory_space<vmem>>, vector<8x16xf32>,
    return
  }
  func.func @transform_0(%arg0: i32) -> (i32, i32) {
    %c0_i32 = arith.constant 0 : i32
    %c0_i32_0 = arith.constant 0 : i32
    return %arg0, %c0_i32 : i32, i32
  }
  func.func @transform_1(%arg0: i32) -> (i32, i32) {
    %c0_i32 = arith.constant 0 : i32
    %c0_i32_0 = arith.constant 0 : i32
    return %arg0, %c0_i32 : i32, i32
  }
  func.func @transform_2(%arg0: i32) -> (i32, i32) {
    %c0_i32 = arith.constant 0 : i32
    %c0_i32_0 = arith.constant 0 : i32
    %c0_i32_1 = arith.constant 0 : i32
    return %c0_i32, %c0_i32_0 : i32, i32
  }
  func.func @transform_3(%arg0: i32) -> (i32, i32) {
    %c0_i32 = arith.constant 0 : i32
    %c0_i32_0 = arith.constant 0 : i32
    return %arg0, %c0_i32 : i32, i32
  }
}

</mosaic_0001>

<llo_original>
// kernel: tpu_custom_call.1
$region0: #{tpu_custom_call.1}
  #allocation0 [shape = 'u32[]', space=smem, size = 0x4, offset = 0x4, fixed_abs, tag = 'smem constant byte address 0x4 - core index']
  #allocation1 [shape = 'u32[72,128]{1,0:T(1,128)}', space=vmem, size = 0x9000, scoped, tag = 'internal scratch']
  %s0 = inlined_call_operand.hbm [shape: f32[8,16], index: 0, kind: input, shape index: {}]
  %s1 = inlined_call_operand.hbm [shape: f32[8,8], index: 1, kind: input, shape index: {}]
  %s2 = inlined_call_operand.hbm [shape: f32[200,128], index: 2, kind: input, shape index: {}]
  %s3 = inlined_call_operand.hbm [shape: f32[8,128], index: 3, kind: output, shape index: {}]
  %s4 = sld [smem:[#allocation0]]
  $region34: #{tpu_custom_call.1} parent=0
    _
  %s6 = ssub.s32 1, %s4
  %s7 = scalar_select 0, %s6, %s4
  $region1: #{tpu_custom_call.1} parent=0
    #allocation2 [shape = 'u8[4096]{0}', space=vmem, size = 0x1000, scoped, tag = 'input window, operand 0, single buffered']
    #allocation3 [shape = 's32[1]{0}', space=sflag, size = 0x4, scoped, tag = 'scoped memory for tpu_custom_call.1']
    #allocation4 [shape = 's32[1]{0}', space=sflag, size = 0x4, scoped, tag = 'scoped memory for tpu_custom_call.1']
    #allocation5 [shape = 'u8[4096]{0}', space=vmem, size = 0x1000, scoped, tag = 'input window, operand 1, single buffered']
    #allocation6 [shape = 's32[1]{0}', space=sflag, size = 0x4, scoped, tag = 'scoped memory for tpu_custom_call.1']
    #allocation7 [shape = 'u8[102400]{0}', space=vmem, size = 0x19000, scoped, tag = 'input window, operand 2, single buffered']
    #allocation8 [shape = 'u8[4096]{0}', space=vmem, size = 0x1000, scoped, tag = 'output window, operand 0, single buffered']
    %8 = vsyncpa [#allocation3], 0
    %9 = vsyncpa [#allocation6], 0
    %10 = vsyncpa [#allocation4], 0
    // Predicated region
    $region2: #{tpu_custom_call.1} parent=1 // pred_check
      _
    $region3: #{tpu_custom_call.1} parent=1 // pred_check_branch
      %12 = sbr.rel (0) target = $region5
    $region4: #{tpu_custom_call.1} parent=1 // pred_region
      %14 = vsyncadd [#allocation3], 0
      %s16 = sshll.u32 %s0, 4
      %s17 = int_to_ptr.hbm [resolvable:$true] %s16
      %s18 = sshll.u32 [#allocation2], 4
      %s19 = int_to_ptr.vmem [resolvable:$true] %s18
      %21 = dma.hbm_to_vmem [thread:$0]  %s17, 128, %s19, [#allocation3]
    $region5: #{tpu_custom_call.1} parent=1 // pred_fallthru
      _
    // Predicated region
    $region6: #{tpu_custom_call.1} parent=1 // pred_check
      _
    $region7: #{tpu_custom_call.1} parent=1 // pred_check_branch
      %23 = sbr.rel (0) target = $region9
    $region8: #{tpu_custom_call.1} parent=1 // pred_region
      %25 = vsyncadd [#allocation6], 0
      %s27 = sshll.u32 %s1, 4
      %s28 = int_to_ptr.hbm [resolvable:$true] %s27
      %s29 = sshll.u32 [#allocation5], 4
      %s30 = int_to_ptr.vmem [resolvable:$true] %s29
      %32 = dma.hbm_to_vmem [thread:$0]  %s28, 128, %s30, [#allocation6]
    $region9: #{tpu_custom_call.1} parent=1 // pred_fallthru
      _
    // Predicated region
    $region10: #{tpu_custom_call.1} parent=1 // pred_check
      _
    $region11: #{tpu_custom_call.1} parent=1 // pred_check_branch
      %34 = sbr.rel (0) target = $region13
    $region12: #{tpu_custom_call.1} parent=1 // pred_region
      %36 = vsyncadd [#allocation6], 0
      %s37 = sshll.u32 %s2, 4
      %s38 = int_to_ptr.hbm [resolvable:$true] %s37
      %s39 = sshll.u32 [#allocation7], 4
      %s40 = int_to_ptr.vmem [resolvable:$true] %s39
      %45 = dma.hbm_to_vmem [thread:$0]  %s38, 3200, %s40, [#allocation6], 128, 128, 8
    $region13: #{tpu_custom_call.1} parent=1 // pred_fallthru
      _
    // Predicated region
    $region14: #{tpu_custom_call.1} parent=1 // pred_check
      _
    $region15: #{tpu_custom_call.1} parent=1 // pred_check_branch
      %47 = sbr.rel (0) target = $region17
    $region16: #{tpu_custom_call.1} parent=1 // pred_region
      %49 = dma.done [#allocation3], 128
    $region17: #{tpu_custom_call.1} parent=1 // pred_fallthru
      _
    // Predicated region
    $region18: #{tpu_custom_call.1} parent=1 // pred_check
      _
    $region19: #{tpu_custom_call.1} parent=1 // pred_check_branch
      %51 = sbr.rel (0) target = $region21
    $region20: #{tpu_custom_call.1} parent=1 // pred_region
      %53 = dma.done [#allocation6], 128
    $region21: #{tpu_custom_call.1} parent=1 // pred_fallthru
      _
    // Predicated region
    $region22: #{tpu_custom_call.1} parent=1 // pred_check
      _
    $region23: #{tpu_custom_call.1} parent=1 // pred_check_branch
      %55 = sbr.rel (0) target = $region25
    $region24: #{tpu_custom_call.1} parent=1 // pred_region
      %57 = dma.done [#allocation6], 3200
    $region25: #{tpu_custom_call.1} parent=1 // pred_fallthru
      _
    %v58 = vld [vmem:[#allocation2] sm:$0xff]
    %v59 = vld [vmem:[#allocation5] sm:$0xff]
    %v60 = vld [vmem:[#allocation7] sm:$0xff]
    %v61 = vld [vmem:[#allocation7 + $0x8] sm:$0xff]
    %v62 = vld [vmem:[#allocation7 + $0x10] sm:$0x1]
    %v63 = vperm.slane %v62, 0
    %vm64 = vcmask 130048
    %v66 = vsel %vm64, %v58, 0
    %68 = vmatpush.msra.mxu0 0.0
    %69 = vmatpush.msra.mxu0 0.0
    %70 = vmatpush.msra.mxu0 0.0
    %71 = vmatpush.msra.mxu0 0.0
    %72 = vmatpush.msra.mxu0 0.0
    %73 = vmatpush.msra.mxu0 0.0
    %74 = vmatpush.msra.mxu0 0.0
    %75 = vmatpush.msra.mxu0 0.0
    %76 = vmatpush.msra.mxu0 0.0
    %77 = vmatpush.msra.mxu0 0.0
    %78 = vmatpush.msra.mxu0 0.0
    %79 = vmatpush.msra.mxu0 0.0
    %80 = vmatpush.msra.mxu0 0.0
    %81 = vmatpush.msra.mxu0 0.0
    %82 = vmatpush.msra.mxu0 %v61
    %83 = vmatpush.msra.mxu0 %v60
    %84 = vmatmul.f32.gmra.mxu0 %v66
    %v85 = vpop.f32.mrf.mxu0
    %v86 = vadd.f32 %v63, %v85
    %87 = vdwg.mxu0
    %v88 = vmax.f32 %v86, 0.0
    %v89 = vld [vmem:[#allocation7 + $0x18] sm:$0xff]
    %v90 = vld [vmem:[#allocation7 + $0x20] sm:$0xff]
    %v91 = vld [vmem:[#allocation7 + $0x28] sm:$0xff]
    %v92 = vld [vmem:[#allocation7 + $0x30] sm:$0xff]
    %v93 = vld [vmem:[#allocation7 + $0x58] sm:$0x1]
    %v94 = vperm.slane %v93, 0
    %vm95 = vcmask 261120
    %v97 = vsel %vm95, %v88, 0
    %99 = vmatpush.msra.mxu0 0.0
    %100 = vmatpush.msra.mxu0 0.0
    %101 = vmatpush.msra.mxu0 0.0
    %102 = vmatpush.msra.mxu0 0.0
    %103 = vmatpush.msra.mxu0 0.0
    %104 = vmatpush.msra.mxu0 0.0
    %105 = vmatpush.msra.mxu0 0.0
    %106 = vmatpush.msra.mxu0 0.0
    %107 = vmatpush.msra.mxu0 0.0
    %108 = vmatpush.msra.mxu0 0.0
    %109 = vmatpush.msra.mxu0 0.0
    %110 = vmatpush.msra.mxu0 0.0
    %111 = vmatpush.msra.mxu0 %v92
    %112 = vmatpush.msra.mxu0 %v91
    %113 = vmatpush.msra.mxu0 %v90
    %114 = vmatpush.msra.mxu0 %v89
    %115 = vmatmul.f32.gmra.mxu0 %v97
    %v116 = vpop.f32.mrf.mxu0
    %v117 = vadd.f32 %v94, %v116
    %118 = vdwg.mxu0
    %v119 = vld [vmem:[#allocation7 + $0x38] sm:$0xff]
    %v120 = vld [vmem:[#allocation7 + $0x40] sm:$0xff]
    %v121 = vld [vmem:[#allocation7 + $0x48] sm:$0xff]
    %v122 = vld [vmem:[#allocation7 + $0x50] sm:$0xff]
    %v123 = vld [vmem:[#allocation7 + $0x60] sm:$0x1]
    %v124 = vperm.slane %v123, 0
    %125 = vmatpush.msra.mxu0 0.0
    %126 = vmatpush.msra.mxu0 0.0
    %127 = vmatpush.msra.mxu0 0.0
    %128 = vmatpush.msra.mxu0 0.0
    %129 = vmatpush.msra.mxu0 0.0
    %130 = vmatpush.msra.mxu0 0.0
    %131 = vmatpush.msra.mxu0 0.0
    %132 = vmatpush.msra.mxu0 0.0
    %133 = vmatpush.msra.mxu0 0.0
    %134 = vmatpush.msra.mxu0 0.0
    %135 = vmatpush.msra.mxu0 0.0
    %136 = vmatpush.msra.mxu0 0.0
    %137 = vmatpush.msra.mxu0 %v122
    %138 = vmatpush.msra.mxu0 %v121
    %139 = vmatpush.msra.mxu0 %v120
    %140 = vmatpush.msra.mxu0 %v119
    %141 = vmatmul.f32.gmra.mxu0 %v97
    %v142 = vpop.f32.mrf.mxu0
    %v143 = vadd.f32 %v124, %v142
    %144 = vdwg.mxu0
    %v145 = vmul.f32 %v143, 1.442695
    %v146 = vpow.pop %v145
    %v147 = vmul.f32 %v146, %v59
    %v148 = vadd.f32 %v117, %v147
    %v149 = vld [vmem:[#allocation7 + $0x68] sm:$0xff]
    %v150 = vld [vmem:[#allocation7 + $0x70] sm:$0x1]
    %v151 = vperm.slane %v150, 0
    %vm152 = vcmask 64512
    %v154 = vsel %vm152, %v148, 0
    %156 = vmatpush.msra.mxu0 0.0
    %157 = vmatpush.msra.mxu0 0.0
    %158 = vmatpush.msra.mxu0 0.0
    %159 = vmatpush.msra.mxu0 0.0
    %160 = vmatpush.msra.mxu0 0.0
    %161 = vmatpush.msra.mxu0 0.0
    %162 = vmatpush.msra.mxu0 0.0
    %163 = vmatpush.msra.mxu0 0.0
    %164 = vmatpush.msra.mxu0 0.0
    %165 = vmatpush.msra.mxu0 0.0
    %166 = vmatpush.msra.mxu0 0.0
    %167 = vmatpush.msra.mxu0 0.0
    %168 = vmatpush.msra.mxu0 0.0
    %169 = vmatpush.msra.mxu0 0.0
    %170 = vmatpush.msra.mxu0 0.0
    %171 = vmatpush.msra.mxu0 %v149
    %172 = vmatmul.f32.gmra.mxu0 %v154
    %v173 = vpop.f32.mrf.mxu0
    %v174 = vadd.f32 %v151, %v173
    %175 = vdwg.mxu0
    %v176 = vmax.f32 %v174, 0.0
    %v177 = vld [vmem:[#allocation7 + $0x78] sm:$0xff]
    %v178 = vld [vmem:[#allocation7 + $0x80] sm:$0xff]
    %v179 = vld [vmem:[#allocation7 + $0x88] sm:$0xff]
    %v180 = vld [vmem:[#allocation7 + $0x90] sm:$0xff]
    %v181 = vld [vmem:[#allocation7 + $0xb8] sm:$0x1]
    %v182 = vperm.slane %v181, 0
    %v184 = vsel %vm95, %v176, 0
    %186 = vmatpush.msra.mxu0 0.0
    %187 = vmatpush.msra.mxu0 0.0
    %188 = vmatpush.msra.mxu0 0.0
    %189 = vmatpush.msra.mxu0 0.0
    %190 = vmatpush.msra.mxu0 0.0
    %191 = vmatpush.msra.mxu0 0.0
    %192 = vmatpush.msra.mxu0 0.0
    %193 = vmatpush.msra.mxu0 0.0
    %194 = vmatpush.msra.mxu0 0.0
    %195 = vmatpush.msra.mxu0 0.0
    %196 = vmatpush.msra.mxu0 0.0
    %197 = vmatpush.msra.mxu0 0.0
    %198 = vmatpush.msra.mxu0 %v180
    %199 = vmatpush.msra.mxu0 %v179
    %200 = vmatpush.msra.mxu0 %v178
    %201 = vmatpush.msra.mxu0 %v177
    %202 = vmatmul.f32.gmra.mxu0 %v184
    %v203 = vpop.f32.mrf.mxu0
    %v204 = vadd.f32 %v182, %v203
    %205 = vdwg.mxu0
    %v206 = vld [vmem:[#allocation7 + $0x98] sm:$0xff]
    %v207 = vld [vmem:[#allocation7 + $0xa0] sm:$0xff]
    %v208 = vld [vmem:[#allocation7 + $0xa8] sm:$0xff]
    %v209 = vld [vmem:[#allocation7 + $0xb0] sm:$0xff]
    %v210 = vld [vmem:[#allocation7 + $0xc0] sm:$0x1]
    %v211 = vperm.slane %v210, 0
    %212 = vmatpush.msra.mxu0 0.0
    %213 = vmatpush.msra.mxu0 0.0
    %214 = vmatpush.msra.mxu0 0.0
    %215 = vmatpush.msra.mxu0 0.0
    %216 = vmatpush.msra.mxu0 0.0
    %217 = vmatpush.msra.mxu0 0.0
    %218 = vmatpush.msra.mxu0 0.0
    %219 = vmatpush.msra.mxu0 0.0
    %220 = vmatpush.msra.mxu0 0.0
    %221 = vmatpush.msra.mxu0 0.0
    %222 = vmatpush.msra.mxu0 0.0
    %223 = vmatpush.msra.mxu0 0.0
    %224 = vmatpush.msra.mxu0 %v209
    %225 = vmatpush.msra.mxu0 %v208
    %226 = vmatpush.msra.mxu0 %v207
    %227 = vmatpush.msra.mxu0 %v206
    %228 = vmatmul.f32.gmra.mxu0 %v184
    %v229 = vpop.f32.mrf.mxu0
    %v230 = vadd.f32 %v211, %v229
    %231 = vdwg.mxu0
    %v232 = vmul.f32 %v230, 1.442695
    %v233 = vpow.pop %v232
    %234 = vst [vmem:[#allocation8] sm:$0xff] 0.0
    %235 = vst.msk [vmem:[#allocation8] sm:$0xff] %vm152, %v148
    %237 = vrot.lane.b32.xlu0 %v117, 8
    %v238 = vpop.permute.xlu0 %237
    %vm240 = vcmask 130112
    %241 = vst.msk [vmem:[#allocation8] sm:$0xff] %vm240, %v238
    %243 = vrot.lane.b32.xlu0 %v146, 16
    %v244 = vpop.permute.xlu0 %243
    %vm246 = vcmask 195712
    %247 = vst.msk [vmem:[#allocation8] sm:$0xff] %vm246, %v244
    %249 = vrot.lane.b32.xlu0 %v204, 24
    %v250 = vpop.permute.xlu0 %249
    %vm252 = vcmask 326848
    %253 = vst.msk [vmem:[#allocation8] sm:$0xff] %vm252, %v250
    %255 = vrot.lane.b32.xlu0 %v233, 40
    %v256 = vpop.permute.xlu0 %255
    %vm258 = vcmask 458048
    %259 = vst.msk [vmem:[#allocation8] sm:$0xff] %vm258, %v256
    // Predicated region
    $region26: #{tpu_custom_call.1} parent=1 // pred_check
      _
    $region27: #{tpu_custom_call.1} parent=1 // pred_check_branch
      %261 = sbr.rel (0) target = $region29
    $region28: #{tpu_custom_call.1} parent=1 // pred_region
      %263 = vsyncadd [#allocation4], 0
      %s265 = sshll.u32 [#allocation8], 4
      %s266 = int_to_ptr.vmem [resolvable:$true] %s265
      %s267 = sshll.u32 %s3, 4
      %s268 = int_to_ptr.hbm [resolvable:$true] %s267
      %270 = dma.vmem_to_hbm [thread:$0]  %s266, 128, %s268, [#allocation4]
    $region29: #{tpu_custom_call.1} parent=1 // pred_fallthru
      _
    // Predicated region
    $region30: #{tpu_custom_call.1} parent=1 // pred_check
      _
    $region31: #{tpu_custom_call.1} parent=1 // pred_check_branch
      %272 = sbr.rel (0) target = $region33
    $region32: #{tpu_custom_call.1} parent=1 // pred_region
      %274 = dma.done [#allocation4], 128
    $region33: #{tpu_custom_call.1} parent=1 // pred_fallthru
      _
    %275 = vsyncpa [#allocation3], 1
    %276 = vsyncpa [#allocation6], 1
    %277 = vsyncpa [#allocation4], 1

</llo_original>
